<compile_context>
chip_gen: v5e
topology: v5e:2x2
jax: 0.10.0
libtpu: 0.0.40
codegen_flags: <defaults>
</compile_context>

<pallas_src>
import functools

import jax
import jax.numpy as jnp
from jax.experimental import pallas as pl
from jax.experimental.pallas import tpu as pltpu


# ---------------------------------------------------------------------------
# Blur kernel (one (bt, H, W) tile per grid step).
# ---------------------------------------------------------------------------
def _blur_kernel(x_ref, bh_ref, bw_ref, o_ref):
    # x_ref : VMEM (bt, H, W)   image tile (bt = fused batch*channel rows)
    # bh_ref: VMEM (H, H)       banded blur matrix acting on the H axis
    # bw_ref: VMEM (W, W)       banded blur matrix acting on the W axis
    bt, H, W = x_ref.shape
    x = x_ref[...].astype(jnp.float32)                      # (bt, H, W)

    # blur along W: contract the lane axis with the (W, W) band matrix (MXU).
    # The reshape only merges leading dims (W stays minor-most) -> free.
    t = jnp.dot(x.reshape(bt * H, W), bw_ref[...],
                preferred_element_type=jnp.float32)         # (bt*H, W)
    t = t.reshape(bt, H, W)

    # blur along H: y[n, i, w] = sum_h Bh[i, h] * t[n, h, w]
    y = jnp.einsum("ih,nhw->niw", bh_ref[...], t,
                   preferred_element_type=jnp.float32)      # (bt, H, W)

    o_ref[...] = y.astype(o_ref.dtype)


def _banded_blur_matrix(n: int, dtype=jnp.float32) -> jax.Array:
    """Symmetric band matrix M with M[a, b] = w[b - a + 1], w = [.25, .5, .25]."""
    w = jnp.array([0.25, 0.5, 0.25], dtype=dtype)
    idx = jnp.arange(n)
    diff = idx[None, :] - idx[:, None]                      # b - a
    in_band = jnp.abs(diff) <= 1
    return jnp.where(in_band, w[jnp.clip(diff + 1, 0, 2)], 0.0).astype(dtype)


def _pick_row_tile(n_rows: int, row_bytes: int) -> int:
    """Largest divisor of n_rows that (a) keeps one block under ~512 KiB and
    (b) leaves at least two grid steps when possible (pipelining / megacore)."""
    budget_rows = max(1, (512 * 1024) // max(1, row_bytes))
    cap = min(n_rows, budget_rows)
    if n_rows > 1:
        cap = min(cap, max(1, n_rows // 2))
    bt = 1
    for cand in range(1, cap + 1):
        if n_rows % cand == 0:
            bt = cand
    return bt


def _blur3x3(x: jax.Array) -> jax.Array:
    """3x3 separable Gaussian blur (zero padding), tiled Pallas kernel."""
    B, C, H, W = x.shape
    N = B * C
    x3 = x.reshape(N, H, W)                                  # leading-dim fuse

    bh = _banded_blur_matrix(H)
    bw = _banded_blur_matrix(W)

    itemsize = jnp.dtype(x.dtype).itemsize
    bt = _pick_row_tile(N, H * W * itemsize)
    grid = (N // bt,)

    out = pl.pallas_call(
        _blur_kernel,
        out_shape=jax.ShapeDtypeStruct((N, H, W), x.dtype),
        grid=grid,
        in_specs=[
            pl.BlockSpec((bt, H, W), lambda i: (i, 0, 0)),   # image tile
            pl.BlockSpec((H, H), lambda i: (0, 0)),          # Bh (small, resident)
            pl.BlockSpec((W, W), lambda i: (0, 0)),          # Bw (small, resident)
        ],
        out_specs=pl.BlockSpec((bt, H, W), lambda i: (i, 0, 0)),
        compiler_params=pltpu.CompilerParams(
            dimension_semantics=("parallel",),               # megacore on v7x
            vmem_limit_bytes=32 * 1024 * 1024,
        ),
        cost_estimate=pl.CostEstimate(
            flops=2 * N * H * W * (H + W),
            transcendentals=0,
            bytes_accessed=2 * N * H * W * itemsize + (H * H + W * W) * 4,
        ),
    )(x3, bh, bw)

    return out.reshape(B, C, H, W)


# ---------------------------------------------------------------------------
# RandomApply wrapper: coin flip outside the kernel.
# ---------------------------------------------------------------------------
@jax.jit
def random_apply(x: jax.Array, key: jax.Array, p) -> jax.Array:
    """RandomApply(fn=gaussian_blur3x3, p): apply blur with probability p."""
    u = jax.random.uniform(key, ())
    # Skip the kernel entirely (no HBM traffic, no compute) on the identity path.
    return jax.lax.cond(u <= p, _blur3x3, lambda v: v, x)


# ---------------------------------------------------------------------------
# Pure-JAX reference for the sanity checks.
# ---------------------------------------------------------------------------
def _reference(x, key, p):
    u = jax.random.uniform(key, ())
    bh = _banded_blur_matrix(x.shape[2])
    bw = _banded_blur_matrix(x.shape[3])
    blurred = jnp.einsum("ih,bchw,wk->bcik", bh, x.astype(jnp.float32), bw)
    return jnp.where(u <= p, blurred.astype(x.dtype), x)


if __name__ == "__main__":
    key = jax.random.PRNGKey(0)
    kx, kcoin = jax.random.split(key)

    B, C, H, W = 2, 4, 16, 16
    x = jax.random.normal(kx, (B, C, H, W), dtype=jnp.float32)

    # p = 1.0 -> blur branch always taken: exercises the Pallas kernel.
    out_blur = random_apply(x, kcoin, 1.0)
    jax.block_until_ready(out_blur)
    assert out_blur.shape == x.shape and out_blur.dtype == x.dtype
    assert jnp.allclose(out_blur, _reference(x, kcoin, 1.0), atol=1e-5, rtol=1e-5)

    # p = 0.0 -> identity branch: kernel (and its HBM traffic) is skipped.
    out_id = random_apply(x, kcoin, 0.0)
    jax.block_until_ready(out_id)
    assert jnp.allclose(out_id, _reference(x, kcoin, 0.0), atol=1e-5, rtol=1e-5)

    # p = 0.8 -> the module's stochastic behaviour with the given key.
    out = random_apply(x, kcoin, 0.8)
    jax.block_until_ready(out)
    assert jnp.allclose(out, _reference(x, kcoin, 0.8), atol=1e-5, rtol=1e-5)

    print("KERNEL_OK")
</pallas_src>

<mosaic_0001>
module attributes {stable_mosaic.version = 11 : i64} {
  func.func @_blur_kernel(%arg0: i32, %arg1: memref<4x16x16xf32, #tpu.memory_space<vmem>>, %arg2: memref<16x16xf32, #tpu.memory_space<vmem>>, %arg3: memref<16x16xf32, #tpu.memory_space<vmem>>, %arg4: memref<4x16x16xf32, #tpu.memory_space<vmem>>) attributes {dimension_semantics = [#tpu.dimension_semantics<parallel>], iteration_bounds = array<i64: 2>, scalar_prefetch = 0 : i64, scratch_operands = 0 : i64, tpu.core_type = #tpu.core_type<tc>, window_params = [{transform_indices = @transform_0, window_bounds = array<i64: 4, 16, 16>}, {pipeline_mode = #tpu.pipeline_mode<synchronous>, transform_indices = @transform_1, window_bounds = array<i64: 16, 16>}, {pipeline_mode = #tpu.pipeline_mode<synchronous>, transform_indices = @transform_2, window_bounds = array<i64: 16, 16>}, {transform_indices = @transform_3, window_bounds = array<i64: 4, 16, 16>}]} {
    %c0 = arith.constant 0 : index
    %c0_0 = arith.constant 0 : index
    %c0_1 = arith.constant 0 : index
    %0 = vector.load %arg1[%c0, %c0_0, %c0_1] : memref<4x16x16xf32, #tpu.memory_space<vmem>>, vector<4x16x16xf32>
    %1 = vector.shape_cast %0 : vector<4x16x16xf32> to vector<64x16xf32>
    %c0_2 = arith.constant 0 : index
    %c0_3 = arith.constant 0 : index
    %2 = vector.load %arg3[%c0_2, %c0_3] : memref<16x16xf32, #tpu.memory_space<vmem>>, vector<16x16xf32>
    %cst = arith.constant dense<0.000000e+00> : vector<64x16xf32>
    %3 = tpu.matmul %1, %2, %cst {dimension_numbers = #tpu.dot_dimension_numbers<[1], [0], [0], [1], [0, 0, 1, 1], [], []>} : vector<64x16xf32>, vector<16x16xf32>, vector<64x16xf32> -> vector<64x16xf32>
    %4 = vector.shape_cast %3 : vector<64x16xf32> to vector<4x16x16xf32>
    %c0_4 = arith.constant 0 : index
    %c0_5 = arith.constant 0 : index
    %5 = vector.load %arg2[%c0_4, %c0_5] : memref<16x16xf32, #tpu.memory_space<vmem>>, vector<16x16xf32>
    "tpu.trace_start"() <{level = 10 : i32, message = "ih,nhw->niw"}> : () -> ()
    %cst_6 = arith.constant dense<0.000000e+00> : vector<4x16x16xf32>
    %6 = tpu.matmul %4, %5, %cst_6 {dimension_numbers = #tpu.dot_dimension_numbers<[1], [1], [0, 2], [0], [0, 0, 0, 2, 1, 0], [], []>} : vector<4x16x16xf32>, vector<16x16xf32>, vector<4x16x16xf32> -> vector<4x16x16xf32>
    %7 = tpu.transpose %6, [0, 2, 1] : vector<4x16x16xf32> -> vector<4x16x16xf32>
    "tpu.trace_stop"() : () -> ()
    %c0_7 = arith.constant 0 : index
    %c0_8 = arith.constant 0 : index
    %c0_9 = arith.constant 0 : index
    %8 = vector.load %arg4[%c0_7, %c0_8, %c0_9] : memref<4x16x16xf32, #tpu.memory_space<vmem>>, vector<4x16x16xf32>
    tpu.vector_store %arg4[%c0_7, %c0_8, %c0_9], %7 {strides = array<i32>} : memref<4x16x16xf32, #tpu.memory_space<vmem>>, vector<4x16x16xf32>,
    return
  }
  func.func @transform_0(%arg0: i32) -> (i32, i32, i32) {
    %c0_i32 = arith.constant 0 : i32
    %c0_i32_0 = arith.constant 0 : i32
    %c0_i32_1 = arith.constant 0 : i32
    return %arg0, %c0_i32, %c0_i32_0 : i32, i32, i32
  }
  func.func @transform_1(%arg0: i32) -> (i32, i32) {
    %c0_i32 = arith.constant 0 : i32
    %c0_i32_0 = arith.constant 0 : i32
    %c0_i32_1 = arith.constant 0 : i32
    return %c0_i32, %c0_i32_0 : i32, i32
  }
  func.func @transform_2(%arg0: i32) -> (i32, i32) {
    %c0_i32 = arith.constant 0 : i32
    %c0_i32_0 = arith.constant 0 : i32
    %c0_i32_1 = arith.constant 0 : i32
    return %c0_i32, %c0_i32_0 : i32, i32
  }
  func.func @transform_3(%arg0: i32) -> (i32, i32, i32) {
    %c0_i32 = arith.constant 0 : i32
    %c0_i32_0 = arith.constant 0 : i32
    %c0_i32_1 = arith.constant 0 : i32
    return %arg0, %c0_i32, %c0_i32_0 : i32, i32, i32
  }
}

</mosaic_0001>

<llo_original>
// kernel: branch_1_fun.1
$region0: #{branch_1_fun.1}
  #allocation0 [shape = 'u32[]', space=smem, size = 0x4, offset = 0x4, fixed_abs, tag = 'smem constant byte address 0x4 - core index']
  #allocation1 [shape = 'u32[72,128]{1,0:T(1,128)}', space=vmem, size = 0x9000, scoped, tag = 'internal scratch']
  %s0 = inlined_call_operand.vmem [shape: f32[8,16,16], index: 0, kind: input, shape index: {}]
  %s1 = inlined_call_operand.vmem [shape: f32[16,16], index: 1, kind: input, shape index: {}, may-alias: {1,2}]
  %s2 = inlined_call_operand.vmem [shape: f32[16,16], index: 2, kind: input, shape index: {}, may-alias: {1,2}]
  %s3 = inlined_call_operand.hbm [shape: f32[8,16,16], index: 3, kind: output, shape index: {}]
  %s4 = sld [smem:[#allocation0]]
  $region45: #{branch_1_fun.1} parent=0
    _
  %s6 = ssub.s32 1, %s4
  %s7 = scalar_select 0, %s6, %s4
  $region1: #{branch_1_fun.1} parent=0
    #allocation2 [shape = 'u8[65536]{0}', space=vmem, size = 0x10000, scoped, tag = 'output window, operand 0']
    #allocation3 [shape = 's32[2]{0}', space=sflag, size = 0x8, scoped, tag = 'scoped memory for branch_1_fun.1']
    %8 = vsyncpa [#allocation3], 0
    %s9 = scalar_lea.sflag [#allocation3], 1
    %10 = vsyncpa %s9, 0
    loop: start=0, step=1, limit=4
    $region2: #{branch_1_fun.1} parent=1 // loop_pre_header
      _
    $region3: #{branch_1_fun.1} parent=1 // loop_header
      %s12 = sphi 0, %s16
      %p13 = scmp.ge.s32.totalorder %s12, 4
      %s22 = sphi 0, %s24
      %s25 = sphi 0, %s22
      %s26 = sphi 0, %s25
      %s42 = sphi 0, %s26
      %s46 = sphi 0, %s46
      %s48 = sphi 0, %s46
      %s49 = sphi 0, %s48
      %s63 = sphi 0, %s49
      %s67 = sphi 0, %s67
      %s69 = sphi 0, %s67
      %s70 = sphi 0, %s69
      %s84 = sphi 0, %s70
      %s90 = sphi 0, %s92
      %s93 = sphi 0, %s90
      %s94 = sphi 0, %s93
      %s110 = sphi 0, %s94
    $region4: #{branch_1_fun.1} parent=1 // loop_header_branch
      %15 = sbr.rel (%p13) target = $region8
    $region5: #{branch_1_fun.1} parent=1 // loop_body
      %s17 = ssub.s32 %s12, 1
      %s18 = ssub.s32 %s12, 2
      %s19 = sadd.s32 %s12, 1
      %s20 = ssub.s32 %s12, %s19
      %p21 = scmp.eq.s32.totalorder %s20, 0
      %s23 = sadd.s32 %s22, 1
      %s24 = scalar_select %p21, %s22, %s23
      %p27 = pneg %p21
      %p28 = scmp.eq.s32.totalorder %s12, 1
      %p29 = por %p27, %p28
      %p30 = scmp.ne.s32.totalorder %s22, %s25
      %p31 = scmp.eq.s32.totalorder %s12, 0
      %p32 = por %p30, %p31
      %p33 = scmp.ne.s32.totalorder %s22, %s25
      %p34 = scmp.eq.s32.totalorder %s17, 1
      %p35 = por %p33, %p34
      %p36 = scmp.ne.s32.totalorder %s25, %s26
      %p37 = scmp.eq.s32.totalorder %s17, 0
      %p38 = por %p36, %p37
      %p39 = scmp.ne.s32.totalorder %s25, %s26
      %p40 = scmp.eq.s32.totalorder %s18, 1
      %p41 = por %p39, %p40
      %p43 = scmp.ne.s32.totalorder %s26, %s42
      %p44 = scmp.eq.s32.totalorder %s18, 0
      %p45 = por %p43, %p44
      %s47 = sadd.s32 %s46, 1
      %p50 = scmp.eq.s32.totalorder %s12, 1
      %p51 = scmp.ne.s32.totalorder %s46, %s48
      %p52 = scmp.eq.s32.totalorder %s12, 0
      %p53 = por %p51, %p52
      %p54 = scmp.ne.s32.totalorder %s46, %s48
      %p55 = scmp.eq.s32.totalorder %s17, 1
      %p56 = por %p54, %p55
      %p57 = scmp.ne.s32.totalorder %s48, %s49
      %p58 = scmp.eq.s32.totalorder %s17, 0
      %p59 = por %p57, %p58
      %p60 = scmp.ne.s32.totalorder %s48, %s49
      %p61 = scmp.eq.s32.totalorder %s18, 1
      %p62 = por %p60, %p61
      %p64 = scmp.ne.s32.totalorder %s49, %s63
      %p65 = scmp.eq.s32.totalorder %s18, 0
      %p66 = por %p64, %p65
      %s68 = sadd.s32 %s67, 1
      %p71 = scmp.eq.s32.totalorder %s12, 1
      %p72 = scmp.ne.s32.totalorder %s67, %s69
      %p73 = scmp.eq.s32.totalorder %s12, 0
      %p74 = por %p72, %p73
      %p75 = scmp.ne.s32.totalorder %s67, %s69
      %p76 = scmp.eq.s32.totalorder %s17, 1
      %p77 = por %p75, %p76
      %p78 = scmp.ne.s32.totalorder %s69, %s70
      %p79 = scmp.eq.s32.totalorder %s17, 0
      %p80 = por %p78, %p79
      %p81 = scmp.ne.s32.totalorder %s69, %s70
      %p82 = scmp.eq.s32.totalorder %s18, 1
      %p83 = por %p81, %p82
      %p85 = scmp.ne.s32.totalorder %s70, %s84
      %p86 = scmp.eq.s32.totalorder %s18, 0
      %p87 = por %p85, %p86
      %s88 = ssub.s32 %s12, %s19
      %p89 = scmp.eq.s32.totalorder %s88, 0
      %s91 = sadd.s32 %s90, 1
      %s92 = scalar_select %p89, %s90, %s91
      %p95 = pneg %p89
      %p96 = scmp.eq.s32.totalorder %s12, 1
      %p97 = por %p95, %p96
      %p98 = scmp.ne.s32.totalorder %s90, %s93
      %p99 = scmp.eq.s32.totalorder %s12, 0
      %p100 = por %p98, %p99
      %p101 = scmp.ne.s32.totalorder %s90, %s93
      %p102 = scmp.eq.s32.totalorder %s17, 1
      %p103 = por %p101, %p102
      %p104 = scmp.ne.s32.totalorder %s93, %s94
      %p105 = scmp.eq.s32.totalorder %s17, 0
      %p106 = por %p104, %p105
      %p107 = scmp.ne.s32.totalorder %s93, %s94
      %p108 = scmp.eq.s32.totalorder %s18, 1
      %p109 = por %p107, %p108
      %p111 = scmp.ne.s32.totalorder %s94, %s110
      %p112 = scmp.eq.s32.totalorder %s18, 0
      %p113 = por %p111, %p112
      %p114 = scmp.le.s32.totalorder 1, %s12
      %p115 = scmp.lt.s32.totalorder %s12, 3
      %p116 = pnand %p114, %p115
      %p117 = pneg %p116
      // Predicated region
      $region9: #{branch_1_fun.1} parent=5 // pred_check
        _
      $region10: #{branch_1_fun.1} parent=5 // pred_check_branch
        %119 = sbr.rel (%p116) target = $region12
      $region11: #{branch_1_fun.1} parent=5 // pred_region
        %s120 = ssub.s32 %s12, 1
        // Predicated region
        $region13: #{branch_1_fun.1} parent=11 // pred_check
          %p121 = pneg %p59
        $region14: #{branch_1_fun.1} parent=11 // pred_check_branch
          %123 = sbr.rel (%p121) target = $region16
        $region15: #{branch_1_fun.1} parent=11 // pred_region
          _
        $region16: #{branch_1_fun.1} parent=11 // pred_fallthru
          _
        // Predicated region
        $region17: #{branch_1_fun.1} parent=11 // pred_check
          %p124 = pneg %p80
        $region18: #{branch_1_fun.1} parent=11 // pred_check_branch
          %126 = sbr.rel (%p124) target = $region20
        $region19: #{branch_1_fun.1} parent=11 // pred_region
          _
        $region20: #{branch_1_fun.1} parent=11 // pred_fallthru
          _
      $region12: #{branch_1_fun.1} parent=5 // pred_fallthru
        _
      %p127 = scmp.lt.s32.totalorder %s12, 2
      // Predicated region
      $region21: #{branch_1_fun.1} parent=5 // pred_check
        %p128 = pneg %p127
      $region22: #{branch_1_fun.1} parent=5 // pred_check_branch
        %130 = sbr.rel (%p128) target = $region24
      $region23: #{branch_1_fun.1} parent=5 // pred_region
        // Predicated region
        $region25: #{branch_1_fun.1} parent=23 // pred_check
          %p131 = pneg %p32
        $region26: #{branch_1_fun.1} parent=23 // pred_check_branch
          %133 = sbr.rel (%p131) target = $region28
        $region27: #{branch_1_fun.1} parent=23 // pred_region
          %s134 = smul.u32 4, %s12
          %p135 = scmp.lt.s32.totalorder %s134, 7
          %s136 = scalar_select %p135, %s134, 7
          %s137 = smul.addr %s136, 2
          %s138 = smul.addr %s137, 8
          %s139 = scalar_lea.vmem %s0, %s138
          %s140 = smul.u32 4, %s12
        $region28: #{branch_1_fun.1} parent=23 // pred_fallthru
          _
      $region24: #{branch_1_fun.1} parent=5 // pred_fallthru
        _
      %p141 = scmp.le.s32.totalorder 1, %s12
      %p142 = scmp.lt.s32.totalorder %s12, 3
      %p143 = pnand %p141, %p142
      %p144 = pneg %p143
      // Predicated region
      $region29: #{branch_1_fun.1} parent=5 // pred_check
        _
      $region30: #{branch_1_fun.1} parent=5 // pred_check_branch
        %146 = sbr.rel (%p143) target = $region32
      $region31: #{branch_1_fun.1} parent=5 // pred_region
        %s147 = ssub.s32 %s12, 1
        %s148 = smul.u32 4, %s17
        %p149 = scmp.lt.s32.totalorder %s148, 7
        %s150 = scalar_select %p149, %s148, 7
        %s151 = smul.addr %s150, 2
        %s152 = smul.addr %s151, 8
        %s153 = scalar_lea.vmem %s0, %s152
        %p154 = pneg %p38
        %p155 = pneg %p35
        %p156 = pneg %p59
        %p157 = pneg %p56
        %p158 = pneg %p80
        %p159 = pneg %p77
        %p160 = pneg %p106
        %p161 = pneg %p103
        %s162 = sand.u32 %s93, 1
        %s163 = scalar_lea.sflag [#allocation3], %s162
        %s164 = sand.u32 %s93, 1
        %s165 = smul.addr %s164, 64
        %s166 = scalar_lea.vmem [#allocation2], %s165
        %s167 = smul.u32 4, %s17
        %p168 = scmp.lt.s32.totalorder %s167, 7
        %s169 = scalar_select %p168, %s167, 7
        %s170 = smul.addr %s169, 2
        %s171 = smul.addr %s170, 8
        %s172 = scalar_lea.vmem %s0, %s171
        %s173 = smul.u32 4, %s17
        %s174 = smul.u32 4, %s17
        %v175 = vld [vmem:[%s172] sm:$0xff]
        %v176 = vld [vmem:[%s172 + $0x8] sm:$0xff]
        %v177 = vld [vmem:[%s172 + $0x10] sm:$0xff]
        %v178 = vld [vmem:[%s172 + $0x18] sm:$0xff]
        %v179 = vld [vmem:[%s172 + $0x20] sm:$0xff]
        %v180 = vld [vmem:[%s172 + $0x28] sm:$0xff]
        %v181 = vld [vmem:[%s172 + $0x30] sm:$0xff]
        %v182 = vld [vmem:[%s172 + $0x38] sm:$0xff]
        %v183 = vld [vmem:[%s2] sm:$0xff]
        %v184 = vld [vmem:[%s2 + $0x8] sm:$0xff]
        %vm185 = vcmask 130048
        %v187 = vsel %vm185, %v175, 0
        %v190 = vsel %vm185, %v176, 0
        %v193 = vsel %vm185, %v177, 0
        %v196 = vsel %vm185, %v178, 0
        %v199 = vsel %vm185, %v179, 0
        %v202 = vsel %vm185, %v180, 0
        %v205 = vsel %vm185, %v181, 0
        %v208 = vsel %vm185, %v182, 0
        %210 = vmatpush.msra.mxu0 0.0
        %211 = vmatpush.msra.mxu0 0.0
        %212 = vmatpush.msra.mxu0 0.0
        %213 = vmatpush.msra.mxu0 0.0
        %214 = vmatpush.msra.mxu0 0.0
        %215 = vmatpush.msra.mxu0 0.0
        %216 = vmatpush.msra.mxu0 0.0
        %217 = vmatpush.msra.mxu0 0.0
        %218 = vmatpush.msra.mxu0 0.0
        %219 = vmatpush.msra.mxu0 0.0
        %220 = vmatpush.msra.mxu0 0.0
        %221 = vmatpush.msra.mxu0 0.0
        %222 = vmatpush.msra.mxu0 0.0
        %223 = vmatpush.msra.mxu0 0.0
        %224 = vmatpush.msra.mxu0 %v184
        %225 = vmatpush.msra.mxu0 %v183
        %226 = vmatmul.f32.gmra.mxu0 %v187
        %v227 = vpop.f32.mrf.mxu0
        %v228 = vadd.f32 0.0, %v227
        %229 = vmatmul.f32.gmra.mxu0 %v190
        %v230 = vpop.f32.mrf.mxu0
        %v231 = vadd.f32 0.0, %v230
        %232 = vmatmul.f32.gmra.mxu0 %v193
        %v233 = vpop.f32.mrf.mxu0
        %v234 = vadd.f32 0.0, %v233
        %235 = vmatmul.f32.gmra.mxu0 %v196
        %v236 = vpop.f32.mrf.mxu0
        %v237 = vadd.f32 0.0, %v236
        %238 = vmatmul.f32.gmra.mxu0 %v199
        %v239 = vpop.f32.mrf.mxu0
        %v240 = vadd.f32 0.0, %v239
        %241 = vmatmul.f32.gmra.mxu0 %v202
        %v242 = vpop.f32.mrf.mxu0
        %v243 = vadd.f32 0.0, %v242
        %244 = vmatmul.f32.gmra.mxu0 %v205
        %v245 = vpop.f32.mrf.mxu0
        %v246 = vadd.f32 0.0, %v245
        %247 = vmatmul.f32.gmra.mxu0 %v208
        %v248 = vpop.f32.mrf.mxu0
        %v249 = vadd.f32 0.0, %v248
        %250 = vdwg.mxu0
        %v251 = vld [vmem:[%s1] sm:$0xff]
        %v252 = vld [vmem:[%s1 + $0x8] sm:$0xff]
        %253 = vxpose.xlu0.b32.start [1/16] %v228, 128
        %254 = vxpose.xlu0.b32.cont [2/16] %v231, 128
        %255 = vxpose.xlu0.b32.cont [3/16] 0.0, 128
        %256 = vxpose.xlu0.b32.cont [4/16] 0.0, 128
        %257 = vxpose.xlu0.b32.cont [5/16] 0.0, 128
        %258 = vxpose.xlu0.b32.cont [6/16] 0.0, 128
        %259 = vxpose.xlu0.b32.cont [7/16] 0.0, 128
        %260 = vxpose.xlu0.b32.cont [8/16] 0.0, 128
        %261 = vxpose.xlu0.b32.cont [9/16] 0.0, 128
        %262 = vxpose.xlu0.b32.cont [10/16] 0.0, 128
        %263 = vxpose.xlu0.b32.cont [11/16] 0.0, 128
        %264 = vxpose.xlu0.b32.cont [12/16] 0.0, 128
        %265 = vxpose.xlu0.b32.cont [13/16] 0.0, 128
        %266 = vxpose.xlu0.b32.cont [14/16] 0.0, 128
        %267 = vxpose.xlu0.b32.cont [15/16] 0.0, 128
        %268 = vxpose.xlu0.b32.end [16/16] 0.0, 128
        %v269 = vpop.trf.xlu0
        %v270 = vpop.trf.xlu0
        %v271 = vpop.trf.xlu0
        %v272 = vpop.trf.xlu0
        %v273 = vpop.trf.xlu0
        %v274 = vpop.trf.xlu0
        %v275 = vpop.trf.xlu0
        %v276 = vpop.trf.xlu0
        %v277 = vpop.trf.xlu0
        %v278 = vpop.trf.xlu0
        %v279 = vpop.trf.xlu0
        %v280 = vpop.trf.xlu0
        %v281 = vpop.trf.xlu0
        %v282 = vpop.trf.xlu0
        %v283 = vpop.trf.xlu0
        %v284 = vpop.trf.xlu0
        %285 = vxpose.xlu0.b32.start [1/16] %v234, 128
        %286 = vxpose.xlu0.b32.cont [2/16] %v237, 128
        %287 = vxpose.xlu0.b32.cont [3/16] 0.0, 128
        %288 = vxpose.xlu0.b32.cont [4/16] 0.0, 128
        %289 = vxpose.xlu0.b32.cont [5/16] 0.0, 128
        %290 = vxpose.xlu0.b32.cont [6/16] 0.0, 128
        %291 = vxpose.xlu0.b32.cont [7/16] 0.0, 128
        %292 = vxpose.xlu0.b32.cont [8/16] 0.0, 128
        %293 = vxpose.xlu0.b32.cont [9/16] 0.0, 128
        %294 = vxpose.xlu0.b32.cont [10/16] 0.0, 128
        %295 = vxpose.xlu0.b32.cont [11/16] 0.0, 128
        %296 = vxpose.xlu0.b32.cont [12/16] 0.0, 128
        %297 = vxpose.xlu0.b32.cont [13/16] 0.0, 128
        %298 = vxpose.xlu0.b32.cont [14/16] 0.0, 128
        %299 = vxpose.xlu0.b32.cont [15/16] 0.0, 128
        %300 = vxpose.xlu0.b32.end [16/16] 0.0, 128
        %v301 = vpop.trf.xlu0
        %v302 = vpop.trf.xlu0
        %v303 = vpop.trf.xlu0
        %v304 = vpop.trf.xlu0
        %v305 = vpop.trf.xlu0
        %v306 = vpop.trf.xlu0
        %v307 = vpop.trf.xlu0
        %v308 = vpop.trf.xlu0
        %v309 = vpop.trf.xlu0
        %v310 = vpop.trf.xlu0
        %v311 = vpop.trf.xlu0
        %v312 = vpop.trf.xlu0
        %v313 = vpop.trf.xlu0
        %v314 = vpop.trf.xlu0
        %v315 = vpop.trf.xlu0
        %v316 = vpop.trf.xlu0
        %317 = vxpose.xlu0.b32.start [1/16] %v240, 128
        %318 = vxpose.xlu0.b32.cont [2/16] %v243, 128
        %319 = vxpose.xlu0.b32.cont [3/16] 0.0, 128
        %320 = vxpose.xlu0.b32.cont [4/16] 0.0, 128
        %321 = vxpose.xlu0.b32.cont [5/16] 0.0, 128
        %322 = vxpose.xlu0.b32.cont [6/16] 0.0, 128
        %323 = vxpose.xlu0.b32.cont [7/16] 0.0, 128
        %324 = vxpose.xlu0.b32.cont [8/16] 0.0, 128
        %325 = vxpose.xlu0.b32.cont [9/16] 0.0, 128
        %326 = vxpose.xlu0.b32.cont [10/16] 0.0, 128
        %327 = vxpose.xlu0.b32.cont [11/16] 0.0, 128
        %328 = vxpose.xlu0.b32.cont [12/16] 0.0, 128
        %329 = vxpose.xlu0.b32.cont [13/16] 0.0, 128
        %330 = vxpose.xlu0.b32.cont [14/16] 0.0, 128
        %331 = vxpose.xlu0.b32.cont [15/16] 0.0, 128
        %332 = vxpose.xlu0.b32.end [16/16] 0.0, 128
        %v333 = vpop.trf.xlu0
        %v334 = vpop.trf.xlu0
        %v335 = vpop.trf.xlu0
        %v336 = vpop.trf.xlu0
        %v337 = vpop.trf.xlu0
        %v338 = vpop.trf.xlu0
        %v339 = vpop.trf.xlu0
        %v340 = vpop.trf.xlu0
        %v341 = vpop.trf.xlu0
        %v342 = vpop.trf.xlu0
        %v343 = vpop.trf.xlu0
        %v344 = vpop.trf.xlu0
        %v345 = vpop.trf.xlu0
        %v346 = vpop.trf.xlu0
        %v347 = vpop.trf.xlu0
        %v348 = vpop.trf.xlu0
        %349 = vxpose.xlu0.b32.start [1/16] %v246, 128
        %350 = vxpose.xlu0.b32.cont [2/16] %v249, 128
        %351 = vxpose.xlu0.b32.cont [3/16] 0.0, 128
        %352 = vxpose.xlu0.b32.cont [4/16] 0.0, 128
        %353 = vxpose.xlu0.b32.cont [5/16] 0.0, 128
        %354 = vxpose.xlu0.b32.cont [6/16] 0.0, 128
        %355 = vxpose.xlu0.b32.cont [7/16] 0.0, 128
        %356 = vxpose.xlu0.b32.cont [8/16] 0.0, 128
        %357 = vxpose.xlu0.b32.cont [9/16] 0.0, 128
        %358 = vxpose.xlu0.b32.cont [10/16] 0.0, 128
        %359 = vxpose.xlu0.b32.cont [11/16] 0.0, 128
        %360 = vxpose.xlu0.b32.cont [12/16] 0.0, 128
        %361 = vxpose.xlu0.b32.cont [13/16] 0.0, 128
        %362 = vxpose.xlu0.b32.cont [14/16] 0.0, 128
        %363 = vxpose.xlu0.b32.cont [15/16] 0.0, 128
        %364 = vxpose.xlu0.b32.end [16/16] 0.0, 128
        %v365 = vpop.trf.xlu0
        %v366 = vpop.trf.xlu0
        %v367 = vpop.trf.xlu0
        %v368 = vpop.trf.xlu0
        %v369 = vpop.trf.xlu0
        %v370 = vpop.trf.xlu0
        %v371 = vpop.trf.xlu0
        %v372 = vpop.trf.xlu0
        %v373 = vpop.trf.xlu0
        %v374 = vpop.trf.xlu0
        %v375 = vpop.trf.xlu0
        %v376 = vpop.trf.xlu0
        %v377 = vpop.trf.xlu0
        %v378 = vpop.trf.xlu0
        %v379 = vpop.trf.xlu0
        %v380 = vpop.trf.xlu0
        %v382 = vsel %vm185, %v269, 0
        %v385 = vsel %vm185, %v270, 0
        %v388 = vsel %vm185, %v301, 0
        %v391 = vsel %vm185, %v302, 0
        %v394 = vsel %vm185, %v333, 0
        %v397 = vsel %vm185, %v334, 0
        %v400 = vsel %vm185, %v365, 0
        %v403 = vsel %vm185, %v366, 0
        %v406 = vsel %vm185, %v251, 0
        %v409 = vsel %vm185, %v252, 0
        %411 = vmatpush.xpose.msra.mxu0 0.0
        %412 = vmatpush.xpose.msra.mxu0 0.0
        %413 = vmatpush.xpose.msra.mxu0 0.0
        %414 = vmatpush.xpose.msra.mxu0 0.0
        %415 = vmatpush.xpose.msra.mxu0 0.0
        %416 = vmatpush.xpose.msra.mxu0 0.0
        %417 = vmatpush.xpose.msra.mxu0 0.0
        %418 = vmatpush.xpose.msra.mxu0 0.0
        %419 = vmatpush.xpose.msra.mxu0 0.0
        %420 = vmatpush.xpose.msra.mxu0 0.0
        %421 = vmatpush.xpose.msra.mxu0 0.0
        %422 = vmatpush.xpose.msra.mxu0 0.0
        %423 = vmatpush.xpose.msra.mxu0 0.0
        %424 = vmatpush.xpose.msra.mxu0 0.0
        %425 = vmatpush.xpose.msra.mxu0 %v409
        %426 = vmatpush.xpose.msra.mxu0 %v406
        %427 = vmatmul.f32.gmra.mxu0 %v382
        %v428 = vpop.f32.mrf.mxu0
        %v429 = vadd.f32 0.0, %v428
        %430 = vmatmul.f32.gmra.mxu0 %v385
        %v431 = vpop.f32.mrf.mxu0
        %v432 = vadd.f32 0.0, %v431
        %433 = vmatmul.f32.gmra.mxu0 %v388
        %v434 = vpop.f32.mrf.mxu0
        %v435 = vadd.f32 0.0, %v434
        %436 = vmatmul.f32.gmra.mxu0 %v391
        %v437 = vpop.f32.mrf.mxu0
        %v438 = vadd.f32 0.0, %v437
        %439 = vmatmul.f32.gmra.mxu0 %v394
        %v440 = vpop.f32.mrf.mxu0
        %v441 = vadd.f32 0.0, %v440
        %442 = vmatmul.f32.gmra.mxu0 %v397
        %v443 = vpop.f32.mrf.mxu0
        %v444 = vadd.f32 0.0, %v443
        %445 = vmatmul.f32.gmra.mxu0 %v400
        %v446 = vpop.f32.mrf.mxu0
        %v447 = vadd.f32 0.0, %v446
        %448 = vmatmul.f32.gmra.mxu0 %v403
        %v449 = vpop.f32.mrf.mxu0
        %v450 = vadd.f32 0.0, %v449
        %451 = vdwg.mxu0
        %452 = vxpose.xlu0.b32.start [1/16] %v429, 128
        %453 = vxpose.xlu0.b32.cont [2/16] %v432, 128
        %454 = vxpose.xlu0.b32.cont [3/16] 0.0, 128
        %455 = vxpose.xlu0.b32.cont [4/16] 0.0, 128
        %456 = vxpose.xlu0.b32.cont [5/16] 0.0, 128
        %457 = vxpose.xlu0.b32.cont [6/16] 0.0, 128
        %458 = vxpose.xlu0.b32.cont [7/16] 0.0, 128
        %459 = vxpose.xlu0.b32.cont [8/16] 0.0, 128
        %460 = vxpose.xlu0.b32.cont [9/16] 0.0, 128
        %461 = vxpose.xlu0.b32.cont [10/16] 0.0, 128
        %462 = vxpose.xlu0.b32.cont [11/16] 0.0, 128
        %463 = vxpose.xlu0.b32.cont [12/16] 0.0, 128
        %464 = vxpose.xlu0.b32.cont [13/16] 0.0, 128
        %465 = vxpose.xlu0.b32.cont [14/16] 0.0, 128
        %466 = vxpose.xlu0.b32.cont [15/16] 0.0, 128
        %467 = vxpose.xlu0.b32.end [16/16] 0.0, 128
        %v468 = vpop.trf.xlu0
        %v469 = vpop.trf.xlu0
        %v470 = vpop.trf.xlu0
        %v471 = vpop.trf.xlu0
        %v472 = vpop.trf.xlu0
        %v473 = vpop.trf.xlu0
        %v474 = vpop.trf.xlu0
        %v475 = vpop.trf.xlu0
        %v476 = vpop.trf.xlu0
        %v477 = vpop.trf.xlu0
        %v478 = vpop.trf.xlu0
        %v479 = vpop.trf.xlu0
        %v480 = vpop.trf.xlu0
        %v481 = vpop.trf.xlu0
        %v482 = vpop.trf.xlu0
        %v483 = vpop.trf.xlu0
        %484 = vxpose.xlu0.b32.start [1/16] %v435, 128
        %485 = vxpose.xlu0.b32.cont [2/16] %v438, 128
        %486 = vxpose.xlu0.b32.cont [3/16] 0.0, 128
        %487 = vxpose.xlu0.b32.cont [4/16] 0.0, 128
        %488 = vxpose.xlu0.b32.cont [5/16] 0.0, 128
        %489 = vxpose.xlu0.b32.cont [6/16] 0.0, 128
        %490 = vxpose.xlu0.b32.cont [7/16] 0.0, 128
        %491 = vxpose.xlu0.b32.cont [8/16] 0.0, 128
        %492 = vxpose.xlu0.b32.cont [9/16] 0.0, 128
        %493 = vxpose.xlu0.b32.cont [10/16] 0.0, 128
        %494 = vxpose.xlu0.b32.cont [11/16] 0.0, 128
        %495 = vxpose.xlu0.b32.cont [12/16] 0.0, 128
        %496 = vxpose.xlu0.b32.cont [13/16] 0.0, 128
        %497 = vxpose.xlu0.b32.cont [14/16] 0.0, 128
        %498 = vxpose.xlu0.b32.cont [15/16] 0.0, 128
        %499 = vxpose.xlu0.b32.end [16/16] 0.0, 128
        %v500 = vpop.trf.xlu0
        %v501 = vpop.trf.xlu0
        %v502 = vpop.trf.xlu0
        %v503 = vpop.trf.xlu0
        %v504 = vpop.trf.xlu0
        %v505 = vpop.trf.xlu0
        %v506 = vpop.trf.xlu0
        %v507 = vpop.trf.xlu0
        %v508 = vpop.trf.xlu0
        %v509 = vpop.trf.xlu0
        %v510 = vpop.trf.xlu0
        %v511 = vpop.trf.xlu0
        %v512 = vpop.trf.xlu0
        %v513 = vpop.trf.xlu0
        %v514 = vpop.trf.xlu0
        %v515 = vpop.trf.xlu0
        %516 = vxpose.xlu0.b32.start [1/16] %v441, 128
        %517 = vxpose.xlu0.b32.cont [2/16] %v444, 128
        %518 = vxpose.xlu0.b32.cont [3/16] 0.0, 128
        %519 = vxpose.xlu0.b32.cont [4/16] 0.0, 128
        %520 = vxpose.xlu0.b32.cont [5/16] 0.0, 128
        %521 = vxpose.xlu0.b32.cont [6/16] 0.0, 128
        %522 = vxpose.xlu0.b32.cont [7/16] 0.0, 128
        %523 = vxpose.xlu0.b32.cont [8/16] 0.0, 128
        %524 = vxpose.xlu0.b32.cont [9/16] 0.0, 128
        %525 = vxpose.xlu0.b32.cont [10/16] 0.0, 128
        %526 = vxpose.xlu0.b32.cont [11/16] 0.0, 128
        %527 = vxpose.xlu0.b32.cont [12/16] 0.0, 128
        %528 = vxpose.xlu0.b32.cont [13/16] 0.0, 128
        %529 = vxpose.xlu0.b32.cont [14/16] 0.0, 128
        %530 = vxpose.xlu0.b32.cont [15/16] 0.0, 128
        %531 = vxpose.xlu0.b32.end [16/16] 0.0, 128
        %v532 = vpop.trf.xlu0
        %v533 = vpop.trf.xlu0
        %v534 = vpop.trf.xlu0
        %v535 = vpop.trf.xlu0
        %v536 = vpop.trf.xlu0
        %v537 = vpop.trf.xlu0
        %v538 = vpop.trf.xlu0
        %v539 = vpop.trf.xlu0
        %v540 = vpop.trf.xlu0
        %v541 = vpop.trf.xlu0
        %v542 = vpop.trf.xlu0
        %v543 = vpop.trf.xlu0
        %v544 = vpop.trf.xlu0
        %v545 = vpop.trf.xlu0
        %v546 = vpop.trf.xlu0
        %v547 = vpop.trf.xlu0
        %548 = vxpose.xlu0.b32.start [1/16] %v447, 128
        %549 = vxpose.xlu0.b32.cont [2/16] %v450, 128
        %550 = vxpose.xlu0.b32.cont [3/16] 0.0, 128
        %551 = vxpose.xlu0.b32.cont [4/16] 0.0, 128
        %552 = vxpose.xlu0.b32.cont [5/16] 0.0, 128
        %553 = vxpose.xlu0.b32.cont [6/16] 0.0, 128
        %554 = vxpose.xlu0.b32.cont [7/16] 0.0, 128
        %555 = vxpose.xlu0.b32.cont [8/16] 0.0, 128
        %556 = vxpose.xlu0.b32.cont [9/16] 0.0, 128
        %557 = vxpose.xlu0.b32.cont [10/16] 0.0, 128
        %558 = vxpose.xlu0.b32.cont [11/16] 0.0, 128
        %559 = vxpose.xlu0.b32.cont [12/16] 0.0, 128
        %560 = vxpose.xlu0.b32.cont [13/16] 0.0, 128
        %561 = vxpose.xlu0.b32.cont [14/16] 0.0, 128
        %562 = vxpose.xlu0.b32.cont [15/16] 0.0, 128
        %563 = vxpose.xlu0.b32.end [16/16] 0.0, 128
        %v564 = vpop.trf.xlu0
        %v565 = vpop.trf.xlu0
        %v566 = vpop.trf.xlu0
        %v567 = vpop.trf.xlu0
        %v568 = vpop.trf.xlu0
        %v569 = vpop.trf.xlu0
        %v570 = vpop.trf.xlu0
        %v571 = vpop.trf.xlu0
        %v572 = vpop.trf.xlu0
        %v573 = vpop.trf.xlu0
        %v574 = vpop.trf.xlu0
        %v575 = vpop.trf.xlu0
        %v576 = vpop.trf.xlu0
        %v577 = vpop.trf.xlu0
        %v578 = vpop.trf.xlu0
        %v579 = vpop.trf.xlu0
        %580 = vst.msk [vmem:[%s166] sm:$0xff] %vm185, %v468
        %581 = vst.msk [vmem:[%s166 + $0x8] sm:$0xff] %vm185, %v469
        %582 = vst.msk [vmem:[%s166 + $0x10] sm:$0xff] %vm185, %v500
        %583 = vst.msk [vmem:[%s166 + $0x18] sm:$0xff] %vm185, %v501
        %584 = vst.msk [vmem:[%s166 + $0x20] sm:$0xff] %vm185, %v532
        %585 = vst.msk [vmem:[%s166 + $0x28] sm:$0xff] %vm185, %v533
        %586 = vst.msk [vmem:[%s166 + $0x30] sm:$0xff] %vm185, %v564
        %587 = vst.msk [vmem:[%s166 + $0x38] sm:$0xff] %vm185, %v565
        %s588 = sand.u32 %s93, 1
        %s589 = scalar_lea.sflag [#allocation3], %s588
        %s590 = sand.u32 %s93, 1
        %s591 = smul.addr %s590, 64
        %s592 = scalar_lea.vmem [#allocation2], %s591
        // Predicated region
        $region33: #{branch_1_fun.1} parent=31 // pred_check
          %p593 = pneg %p103
        $region34: #{branch_1_fun.1} parent=31 // pred_check_branch
          %595 = sbr.rel (%p593) target = $region36
        $region35: #{branch_1_fun.1} parent=31 // pred_region
          %s596 = smul.u32 4, %s17
          %598 = vsyncadd %s589, 0
          %s599 = smul.addr %s596, 2
          %s600 = smul.addr %s599, 8
          %s601 = scalar_lea.hbm %s3, %s600
          %s602 = sshll.u32 %s592, 4
          %s603 = int_to_ptr.vmem [resolvable:$true] %s602
          %s604 = sshll.u32 %s601, 4
          %s605 = int_to_ptr.hbm [resolvable:$true] %s604
          %610 = dma.vmem_to_hbm [thread:$0]  %s603, 1024, %s605, %s589, 128, 128, 8
        $region36: #{branch_1_fun.1} parent=31 // pred_fallthru
          _
      $region32: #{branch_1_fun.1} parent=5 // pred_fallthru
        _
      %p611 = scmp.le.s32.totalorder 2, %s12
      // Predicated region
      $region37: #{branch_1_fun.1} parent=5 // pred_check
        %p612 = pneg %p611
      $region38: #{branch_1_fun.1} parent=5 // pred_check_branch
        %614 = sbr.rel (%p612) target = $region40
      $region39: #{branch_1_fun.1} parent=5 // pred_region
        %s615 = ssub.s32 %s12, 2
        // Predicated region
        $region41: #{branch_1_fun.1} parent=39 // pred_check
          %p616 = pneg %p109
        $region42: #{branch_1_fun.1} parent=39 // pred_check_branch
          %618 = sbr.rel (%p616) target = $region44
        $region43: #{branch_1_fun.1} parent=39 // pred_region
          %s619 = sand.u32 %s94, 1
          %s620 = scalar_lea.sflag [#allocation3], %s619
          %s621 = sand.u32 %s94, 1
          %s622 = smul.addr %s621, 64
          %s623 = scalar_lea.vmem [#allocation2], %s622
          %625 = dma.done %s620, 1024
        $region44: #{branch_1_fun.1} parent=39 // pred_fallthru
          _
      $region40: #{branch_1_fun.1} parent=5 // pred_fallthru
        _
    $region6: #{branch_1_fun.1} parent=1 // loop_footer
      %s16 = sadd.s32 1, %s12
    $region7: #{branch_1_fun.1} parent=1 // loop_footer_branch
      %11 = sbr.rel target = $region3
    $region8: #{branch_1_fun.1} parent=1 // loop_exit
      _
    %626 = vsyncpa [#allocation3], 1
    %s627 = scalar_lea.sflag [#allocation3], 1
    %628 = vsyncpa %s627, 1

</llo_original>
